<compile_context>
chip_gen: v7x
topology: tpu7x:2x2x1
jax: 0.10.0
libtpu: 0.0.40
codegen_flags: <defaults>
</compile_context>

<pallas_src>
import functools
import math

import jax
import jax.numpy as jnp
import numpy as np
from jax.experimental import pallas as pl
from jax.experimental.pallas import tpu as pltpu


def _attn_kernel(x_ref, o_ref, *, n_heads, attn_ch, scale2):
    """One (B_TILE, n_ctx) block: all heads, all batch rows of the block.

    x_ref: (B_TILE, n_ctx, 3*n_heads*attn_ch) interleaved [h0:q|k|v, h1:q|k|v, ...]
    o_ref: (B_TILE, n_ctx, n_heads*attn_ch)   head-major output (PyTorch layout)
    """
    x = x_ref[...]                               # single VMEM load of the block

    for h in range(n_heads):                     # static unroll: MXU stays fed
        base = h * 3 * attn_ch
        q = x[:, :, base:base + attn_ch]                     # (B, n_ctx, attn_ch)
        k = x[:, :, base + attn_ch:base + 2 * attn_ch]       # (B, n_ctx, attn_ch)
        v = x[:, :, base + 2 * attn_ch:base + 3 * attn_ch]   # (B, n_ctx, attn_ch)

        # Fold both d^{-1/4} factors into q (cheap: n_ctx*attn_ch multiplies).
        q = q * jnp.asarray(scale2, dtype=q.dtype)

        # Batched QK^T contracting the last dims (no k transpose), f32 accum.
        s = jnp.einsum('bqc,bkc->bqk', q, k,
                       preferred_element_type=jnp.float32)   # (B, n_ctx, n_ctx)

        # f32 softmax; 1/rowsum is applied to the PV result instead of to the
        # (n_ctx, n_ctx) probabilities (n_ctx*attn_ch mults vs n_ctx^2 divides).
        m = jnp.max(s, axis=-1, keepdims=True)
        p = jnp.exp(s - m)
        inv = pl.reciprocal(jnp.sum(p, axis=-1, keepdims=True), approx=False)
        p = p.astype(x.dtype)                    # matches torch's .type(wdtype)

        out = jnp.einsum('bqk,bkc->bqc', p, v,
                         preferred_element_type=jnp.float32)  # (B, n_ctx, attn_ch)

        # Cast immediately and store this head's lane slice of the output block
        # — nothing f32 stays live across the head loop.
        o_ref[:, :, h * attn_ch:(h + 1) * attn_ch] = (out * inv).astype(o_ref.dtype)


def _choose_b_tile(bs, bytes_in_per_batch, bytes_out_per_batch, n_ctx, attn_ch):
    """Pick how many batch elements to process per grid step."""
    # Live VMEM per batch element: double-buffered input + in-kernel copy,
    # double-buffered output, one head's f32 scores/probs, f32 PV temporaries.
    per_b = (3 * bytes_in_per_batch
             + 2 * bytes_out_per_batch
             + 2 * n_ctx * n_ctx * 4
             + 2 * n_ctx * attn_ch * 4)
    budget = 24 * 1024 * 1024                    # conservative for v5e/v6e/v7x
    max_b_vmem = max(1, budget // per_b)
    # Target >= ~512 KiB of input per step to amortize the ~0.35us step cost.
    target_b = max(1, -(-(512 * 1024) // bytes_in_per_batch))
    desired = min(bs, max_b_vmem, target_b)
    # Keep >= 2 parallel grid steps when possible (v7x has 2 TensorCores/chip).
    if bs >= 2:
        desired = min(desired, max(1, bs // 2))
    # Largest divisor of bs not exceeding `desired` (keeps the grid exact).
    b_tile = max(d for d in range(1, desired + 1) if bs % d == 0)
    return b_tile, per_b


def qkv_multihead_attention(qkv, n_heads):
    """Pallas equivalent of QKVMultiheadAttention.forward."""
    bs, n_ctx, width = qkv.shape
    attn_ch = width // n_heads // 3
    out_width = n_heads * attn_ch
    scale = 1.0 / math.sqrt(math.sqrt(attn_ch))
    itemsize = jnp.dtype(qkv.dtype).itemsize

    bytes_in_per_batch = n_ctx * width * itemsize
    bytes_out_per_batch = n_ctx * out_width * itemsize
    b_tile, per_b = _choose_b_tile(bs, bytes_in_per_batch, bytes_out_per_batch,
                                   n_ctx, attn_ch)
    n_steps = bs // b_tile

    # Explicit scoped-VMEM limit (v5e default is 16 MiB; v7x physical is 64 MiB).
    vmem_limit = int(min(max(2 * per_b * b_tile, 16 * 1024 * 1024),
                         48 * 1024 * 1024))

    cost = pl.CostEstimate(
        flops=4 * bs * n_heads * n_ctx * n_ctx * attn_ch,
        transcendentals=bs * n_heads * n_ctx * n_ctx,
        bytes_accessed=bs * (bytes_in_per_batch + bytes_out_per_batch))

    kernel = functools.partial(_attn_kernel, n_heads=n_heads, attn_ch=attn_ch,
                               scale2=scale * scale)

    return pl.pallas_call(
        kernel,
        out_shape=jax.ShapeDtypeStruct((bs, n_ctx, out_width), qkv.dtype),
        grid=(n_steps,),
        in_specs=[pl.BlockSpec((b_tile, n_ctx, width), lambda b: (b, 0, 0))],
        out_specs=pl.BlockSpec((b_tile, n_ctx, out_width), lambda b: (b, 0, 0)),
        compiler_params=pltpu.CompilerParams(
            dimension_semantics=("parallel",),
            vmem_limit_bytes=vmem_limit),
        cost_estimate=cost,
    )(qkv)


def _reference(qkv, n_heads):
    """Pure-JAX reference mirroring the PyTorch forward exactly."""
    bs, n_ctx, width = qkv.shape
    attn_ch = width // n_heads // 3
    scale = 1.0 / math.sqrt(math.sqrt(attn_ch))
    x = qkv.reshape(bs, n_ctx, n_heads, -1)
    q, k, v = x[..., :attn_ch], x[..., attn_ch:2 * attn_ch], x[..., 2 * attn_ch:]
    w = jnp.einsum('bthc,bshc->bhts', q * scale, k * scale)
    w = jax.nn.softmax(w.astype(jnp.float32), axis=-1).astype(w.dtype)
    return jnp.einsum('bhts,bshc->bthc', w, v).reshape(bs, n_ctx, -1)


if __name__ == "__main__":
    # Small shapes consistent with the module: bs=2, n_ctx=8, n_heads=4, attn_ch=16
    n_heads = 4
    n_ctx = 8
    attn_ch = 16
    bs = 2
    width = 3 * n_heads * attn_ch  # 192

    key = jax.random.PRNGKey(0)
    qkv = jax.random.normal(key, (bs, n_ctx, width), dtype=jnp.float32)

    out = jax.block_until_ready(qkv_multihead_attention(qkv, n_heads))

    ref = _reference(qkv, n_heads)
    np.testing.assert_allclose(np.asarray(out), np.asarray(ref), atol=1e-5, rtol=1e-5)

    print("KERNEL_OK")
</pallas_src>

<mosaic_0001>
module attributes {stable_mosaic.version = 11 : i64} {
  func.func @_attn_kernel(%arg0: i32, %arg1: memref<1x8x192xf32, #tpu.memory_space<vmem>>, %arg2: memref<1x8x64xf32, #tpu.memory_space<vmem>>) attributes {dimension_semantics = [#tpu.dimension_semantics<parallel>], iteration_bounds = array<i64: 2>, scalar_prefetch = 0 : i64, scratch_operands = 0 : i64, tpu.core_type = #tpu.core_type<tc>, window_params = [{transform_indices = @transform_0, window_bounds = array<i64: 1, 8, 192>}, {transform_indices = @transform_1, window_bounds = array<i64: 1, 8, 64>}]} {
    %c0 = arith.constant 0 : index
    %c0_0 = arith.constant 0 : index
    %c0_1 = arith.constant 0 : index
    %0 = vector.load %arg1[%c0, %c0_0, %c0_1] : memref<1x8x192xf32, #tpu.memory_space<vmem>>, vector<1x8x192xf32>
    %1 = vector.extract_strided_slice %0 {offsets = [0, 0, 0], sizes = [1, 8, 16], strides = [1, 1, 1]} : vector<1x8x192xf32> to vector<1x8x16xf32>
    %2 = vector.extract_strided_slice %0 {offsets = [0, 0, 16], sizes = [1, 8, 16], strides = [1, 1, 1]} : vector<1x8x192xf32> to vector<1x8x16xf32>
    %3 = vector.extract_strided_slice %0 {offsets = [0, 0, 32], sizes = [1, 8, 16], strides = [1, 1, 1]} : vector<1x8x192xf32> to vector<1x8x16xf32>
    %cst = arith.constant 2.500000e-01 : f32
    %4 = vector.broadcast %cst : f32 to vector<1x8x16xf32>
    %5 = arith.mulf %1, %4 : vector<1x8x16xf32>
    "tpu.trace_start"() <{level = 10 : i32, message = "bqc,bkc->bqk"}> : () -> ()
    %cst_2 = arith.constant dense<0.000000e+00> : vector<1x8x8xf32>
    %6 = tpu.matmul %5, %2, %cst_2 {dimension_numbers = #tpu.dot_dimension_numbers<[2], [2], [1], [1], [0, 0, 0, 1, 1, 1], [0], [0]>} : vector<1x8x16xf32>, vector<1x8x16xf32>, vector<1x8x8xf32> -> vector<1x8x8xf32>
    "tpu.trace_stop"() : () -> ()
    %cst_3 = arith.constant dense<0xFF800000> : vector<1x8xf32>
    %7 = vector.multi_reduction <maximumf>, %6, %cst_3 [2] : vector<1x8x8xf32> to vector<1x8xf32>
    %8 = vector.shape_cast %7 : vector<1x8xf32> to vector<1x8x1xf32>
    %9 = vector.broadcast %8 : vector<1x8x1xf32> to vector<1x8x8xf32>
    %10 = arith.subf %6, %9 : vector<1x8x8xf32>
    %11 = math.exp %10 : vector<1x8x8xf32>
    %cst_4 = arith.constant dense<0.000000e+00> : vector<1x8xf32>
    %12 = vector.multi_reduction <add>, %11, %cst_4 [2] : vector<1x8x8xf32> to vector<1x8xf32>
    %13 = vector.shape_cast %12 : vector<1x8xf32> to vector<1x8x1xf32>
    %14 = tpu.reciprocal %13 : vector<1x8x1xf32> -> vector<1x8x1xf32>
    "tpu.trace_start"() <{level = 10 : i32, message = "bqk,bkc->bqc"}> : () -> ()
    %cst_5 = arith.constant dense<0.000000e+00> : vector<1x8x16xf32>
    %15 = tpu.matmul %11, %3, %cst_5 {dimension_numbers = #tpu.dot_dimension_numbers<[2], [1], [1], [2], [0, 0, 0, 1, 1, 2], [0], [0]>} : vector<1x8x8xf32>, vector<1x8x16xf32>, vector<1x8x16xf32> -> vector<1x8x16xf32>
    "tpu.trace_stop"() : () -> ()
    %16 = vector.broadcast %14 : vector<1x8x1xf32> to vector<1x8x16xf32>
    %17 = arith.mulf %15, %16 : vector<1x8x16xf32>
    %c0_6 = arith.constant 0 : index
    %c0_7 = arith.constant 0 : index
    %c0_8 = arith.constant 0 : index
    %18 = vector.load %arg2[%c0_6, %c0_7, %c0_8] : memref<1x8x64xf32, #tpu.memory_space<vmem>>, vector<1x8x16xf32>
    tpu.vector_store %arg2[%c0_6, %c0_7, %c0_8], %17 {strides = array<i32>} : memref<1x8x64xf32, #tpu.memory_space<vmem>>, vector<1x8x16xf32>,
    %19 = vector.extract_strided_slice %0 {offsets = [0, 0, 48], sizes = [1, 8, 16], strides = [1, 1, 1]} : vector<1x8x192xf32> to vector<1x8x16xf32>
    %20 = vector.extract_strided_slice %0 {offsets = [0, 0, 64], sizes = [1, 8, 16], strides = [1, 1, 1]} : vector<1x8x192xf32> to vector<1x8x16xf32>
    %21 = vector.extract_strided_slice %0 {offsets = [0, 0, 80], sizes = [1, 8, 16], strides = [1, 1, 1]} : vector<1x8x192xf32> to vector<1x8x16xf32>
    %cst_9 = arith.constant 2.500000e-01 : f32
    %22 = vector.broadcast %cst_9 : f32 to vector<1x8x16xf32>
    %23 = arith.mulf %19, %22 : vector<1x8x16xf32>
    "tpu.trace_start"() <{level = 10 : i32, message = "bqc,bkc->bqk"}> : () -> ()
    %cst_10 = arith.constant dense<0.000000e+00> : vector<1x8x8xf32>
    %24 = tpu.matmul %23, %20, %cst_10 {dimension_numbers = #tpu.dot_dimension_numbers<[2], [2], [1], [1], [0, 0, 0, 1, 1, 1], [0], [0]>} : vector<1x8x16xf32>, vector<1x8x16xf32>, vector<1x8x8xf32> -> vector<1x8x8xf32>
    "tpu.trace_stop"() : () -> ()
    %cst_11 = arith.constant dense<0xFF800000> : vector<1x8xf32>
    %25 = vector.multi_reduction <maximumf>, %24, %cst_11 [2] : vector<1x8x8xf32> to vector<1x8xf32>
    %26 = vector.shape_cast %25 : vector<1x8xf32> to vector<1x8x1xf32>
    %27 = vector.broadcast %26 : vector<1x8x1xf32> to vector<1x8x8xf32>
    %28 = arith.subf %24, %27 : vector<1x8x8xf32>
    %29 = math.exp %28 : vector<1x8x8xf32>
    %cst_12 = arith.constant dense<0.000000e+00> : vector<1x8xf32>
    %30 = vector.multi_reduction <add>, %29, %cst_12 [2] : vector<1x8x8xf32> to vector<1x8xf32>
    %31 = vector.shape_cast %30 : vector<1x8xf32> to vector<1x8x1xf32>
    %32 = tpu.reciprocal %31 : vector<1x8x1xf32> -> vector<1x8x1xf32>
    "tpu.trace_start"() <{level = 10 : i32, message = "bqk,bkc->bqc"}> : () -> ()
    %cst_13 = arith.constant dense<0.000000e+00> : vector<1x8x16xf32>
    %33 = tpu.matmul %29, %21, %cst_13 {dimension_numbers = #tpu.dot_dimension_numbers<[2], [1], [1], [2], [0, 0, 0, 1, 1, 2], [0], [0]>} : vector<1x8x8xf32>, vector<1x8x16xf32>, vector<1x8x16xf32> -> vector<1x8x16xf32>
    "tpu.trace_stop"() : () -> ()
    %34 = vector.broadcast %32 : vector<1x8x1xf32> to vector<1x8x16xf32>
    %35 = arith.mulf %33, %34 : vector<1x8x16xf32>
    %c0_14 = arith.constant 0 : index
    %c0_15 = arith.constant 0 : index
    %c16 = arith.constant 16 : index
    %36 = vector.load %arg2[%c0_14, %c0_15, %c16] : memref<1x8x64xf32, #tpu.memory_space<vmem>>, vector<1x8x16xf32>
    tpu.vector_store %arg2[%c0_14, %c0_15, %c16], %35 {strides = array<i32>} : memref<1x8x64xf32, #tpu.memory_space<vmem>>, vector<1x8x16xf32>,
    %37 = vector.extract_strided_slice %0 {offsets = [0, 0, 96], sizes = [1, 8, 16], strides = [1, 1, 1]} : vector<1x8x192xf32> to vector<1x8x16xf32>
    %38 = vector.extract_strided_slice %0 {offsets = [0, 0, 112], sizes = [1, 8, 16], strides = [1, 1, 1]} : vector<1x8x192xf32> to vector<1x8x16xf32>
    %39 = vector.extract_strided_slice %0 {offsets = [0, 0, 128], sizes = [1, 8, 16], strides = [1, 1, 1]} : vector<1x8x192xf32> to vector<1x8x16xf32>
    %cst_16 = arith.constant 2.500000e-01 : f32
    %40 = vector.broadcast %cst_16 : f32 to vector<1x8x16xf32>
    %41 = arith.mulf %37, %40 : vector<1x8x16xf32>
    "tpu.trace_start"() <{level = 10 : i32, message = "bqc,bkc->bqk"}> : () -> ()
    %cst_17 = arith.constant dense<0.000000e+00> : vector<1x8x8xf32>
    %42 = tpu.matmul %41, %38, %cst_17 {dimension_numbers = #tpu.dot_dimension_numbers<[2], [2], [1], [1], [0, 0, 0, 1, 1, 1], [0], [0]>} : vector<1x8x16xf32>, vector<1x8x16xf32>, vector<1x8x8xf32> -> vector<1x8x8xf32>
    "tpu.trace_stop"() : () -> ()
    %cst_18 = arith.constant dense<0xFF800000> : vector<1x8xf32>
    %43 = vector.multi_reduction <maximumf>, %42, %cst_18 [2] : vector<1x8x8xf32> to vector<1x8xf32>
    %44 = vector.shape_cast %43 : vector<1x8xf32> to vector<1x8x1xf32>
    %45 = vector.broadcast %44 : vector<1x8x1xf32> to vector<1x8x8xf32>
    %46 = arith.subf %42, %45 : vector<1x8x8xf32>
    %47 = math.exp %46 : vector<1x8x8xf32>
    %cst_19 = arith.constant dense<0.000000e+00> : vector<1x8xf32>
    %48 = vector.multi_reduction <add>, %47, %cst_19 [2] : vector<1x8x8xf32> to vector<1x8xf32>
    %49 = vector.shape_cast %48 : vector<1x8xf32> to vector<1x8x1xf32>
    %50 = tpu.reciprocal %49 : vector<1x8x1xf32> -> vector<1x8x1xf32>
    "tpu.trace_start"() <{level = 10 : i32, message = "bqk,bkc->bqc"}> : () -> ()
    %cst_20 = arith.constant dense<0.000000e+00> : vector<1x8x16xf32>
    %51 = tpu.matmul %47, %39, %cst_20 {dimension_numbers = #tpu.dot_dimension_numbers<[2], [1], [1], [2], [0, 0, 0, 1, 1, 2], [0], [0]>} : vector<1x8x8xf32>, vector<1x8x16xf32>, vector<1x8x16xf32> -> vector<1x8x16xf32>
    "tpu.trace_stop"() : () -> ()
    %52 = vector.broadcast %50 : vector<1x8x1xf32> to vector<1x8x16xf32>
    %53 = arith.mulf %51, %52 : vector<1x8x16xf32>
    %c0_21 = arith.constant 0 : index
    %c0_22 = arith.constant 0 : index
    %c32 = arith.constant 32 : index
    %54 = vector.load %arg2[%c0_21, %c0_22, %c32] : memref<1x8x64xf32, #tpu.memory_space<vmem>>, vector<1x8x16xf32>
    tpu.vector_store %arg2[%c0_21, %c0_22, %c32], %53 {strides = array<i32>} : memref<1x8x64xf32, #tpu.memory_space<vmem>>, vector<1x8x16xf32>,
    %55 = vector.extract_strided_slice %0 {offsets = [0, 0, 144], sizes = [1, 8, 16], strides = [1, 1, 1]} : vector<1x8x192xf32> to vector<1x8x16xf32>
    %56 = vector.extract_strided_slice %0 {offsets = [0, 0, 160], sizes = [1, 8, 16], strides = [1, 1, 1]} : vector<1x8x192xf32> to vector<1x8x16xf32>
    %57 = vector.extract_strided_slice %0 {offsets = [0, 0, 176], sizes = [1, 8, 16], strides = [1, 1, 1]} : vector<1x8x192xf32> to vector<1x8x16xf32>
    %cst_23 = arith.constant 2.500000e-01 : f32
    %58 = vector.broadcast %cst_23 : f32 to vector<1x8x16xf32>
    %59 = arith.mulf %55, %58 : vector<1x8x16xf32>
    "tpu.trace_start"() <{level = 10 : i32, message = "bqc,bkc->bqk"}> : () -> ()
    %cst_24 = arith.constant dense<0.000000e+00> : vector<1x8x8xf32>
    %60 = tpu.matmul %59, %56, %cst_24 {dimension_numbers = #tpu.dot_dimension_numbers<[2], [2], [1], [1], [0, 0, 0, 1, 1, 1], [0], [0]>} : vector<1x8x16xf32>, vector<1x8x16xf32>, vector<1x8x8xf32> -> vector<1x8x8xf32>
    "tpu.trace_stop"() : () -> ()
    %cst_25 = arith.constant dense<0xFF800000> : vector<1x8xf32>
    %61 = vector.multi_reduction <maximumf>, %60, %cst_25 [2] : vector<1x8x8xf32> to vector<1x8xf32>
    %62 = vector.shape_cast %61 : vector<1x8xf32> to vector<1x8x1xf32>
    %63 = vector.broadcast %62 : vector<1x8x1xf32> to vector<1x8x8xf32>
    %64 = arith.subf %60, %63 : vector<1x8x8xf32>
    %65 = math.exp %64 : vector<1x8x8xf32>
    %cst_26 = arith.constant dense<0.000000e+00> : vector<1x8xf32>
    %66 = vector.multi_reduction <add>, %65, %cst_26 [2] : vector<1x8x8xf32> to vector<1x8xf32>
    %67 = vector.shape_cast %66 : vector<1x8xf32> to vector<1x8x1xf32>
    %68 = tpu.reciprocal %67 : vector<1x8x1xf32> -> vector<1x8x1xf32>
    "tpu.trace_start"() <{level = 10 : i32, message = "bqk,bkc->bqc"}> : () -> ()
    %cst_27 = arith.constant dense<0.000000e+00> : vector<1x8x16xf32>
    %69 = tpu.matmul %65, %57, %cst_27 {dimension_numbers = #tpu.dot_dimension_numbers<[2], [1], [1], [2], [0, 0, 0, 1, 1, 2], [0], [0]>} : vector<1x8x8xf32>, vector<1x8x16xf32>, vector<1x8x16xf32> -> vector<1x8x16xf32>
    "tpu.trace_stop"() : () -> ()
    %70 = vector.broadcast %68 : vector<1x8x1xf32> to vector<1x8x16xf32>
    %71 = arith.mulf %69, %70 : vector<1x8x16xf32>
    %c0_28 = arith.constant 0 : index
    %c0_29 = arith.constant 0 : index
    %c48 = arith.constant 48 : index
    %72 = vector.load %arg2[%c0_28, %c0_29, %c48] : memref<1x8x64xf32, #tpu.memory_space<vmem>>, vector<1x8x16xf32>
    tpu.vector_store %arg2[%c0_28, %c0_29, %c48], %71 {strides = array<i32>} : memref<1x8x64xf32, #tpu.memory_space<vmem>>, vector<1x8x16xf32>,
    return
  }
  func.func @transform_0(%arg0: i32) -> (i32, i32, i32) {
    %c0_i32 = arith.constant 0 : i32
    %c0_i32_0 = arith.constant 0 : i32
    %c0_i32_1 = arith.constant 0 : i32
    return %arg0, %c0_i32, %c0_i32_0 : i32, i32, i32
  }
  func.func @transform_1(%arg0: i32) -> (i32, i32, i32) {
    %c0_i32 = arith.constant 0 : i32
    %c0_i32_0 = arith.constant 0 : i32
    %c0_i32_1 = arith.constant 0 : i32
    return %arg0, %c0_i32, %c0_i32_0 : i32, i32, i32
  }
}

</mosaic_0001>

<llo_original>
// kernel: tpu_custom_call.1
$region0: #{tpu_custom_call.1}
  #allocation0 [shape = 'u32[]', space=smem, size = 0x4, offset = 0x4, fixed_abs, tag = 'smem constant byte address 0x4 - core index']
  #allocation1 [shape = 'u32[144,128]{1,0:T(1,128)}', space=vmem, size = 0x12000, scoped, tag = 'internal scratch']
  %s0 = inlined_call_operand.hbm [shape: f32[2,8,192], index: 0, kind: input, shape index: {}]
  %s1 = inlined_call_operand.hbm [shape: f32[2,8,64], index: 1, kind: output, shape index: {}]
  %s2 = sld [smem:[#allocation0]]
  $region41: #{tpu_custom_call.1} parent=0
    _
  %s4 = ssub.s32 1, %s2
  %s5 = scalar_select 0, %s4, %s2
  $region1: #{tpu_custom_call.1} parent=0
    #allocation2 [shape = 'u8[16384]{0}', space=vmem, size = 0x4000, scoped, tag = 'input window, operand 0']
    #allocation3 [shape = 's32[2]{0}', space=sflag, size = 0x8, scoped, tag = 'scoped memory for tpu_custom_call.1']
    #allocation4 [shape = 's32[2]{0}', space=sflag, size = 0x8, scoped, tag = 'scoped memory for tpu_custom_call.1']
    #allocation5 [shape = 'u8[8192]{0}', space=vmem, size = 0x2000, scoped, tag = 'output window, operand 0']
    %6 = vsyncpa [#allocation3], 0
    %s7 = scalar_lea.sflag [#allocation3], 1
    %8 = vsyncpa %s7, 0
    %9 = vsyncpa [#allocation4], 0
    %s10 = scalar_lea.sflag [#allocation4], 1
    %11 = vsyncpa %s10, 0
    loop: start=0, step=1, limit=4
    $region2: #{tpu_custom_call.1} parent=1 // loop_pre_header
      _
    $region3: #{tpu_custom_call.1} parent=1 // loop_header
      %s13 = sphi 0, %s17
      %p14 = scmp.ge.s32.totalorder %s13, 4
      %s23 = sphi 0, %s25
      %s26 = sphi 0, %s23
      %s27 = sphi 0, %s26
      %s43 = sphi 0, %s27
      %s49 = sphi 0, %s51
      %s52 = sphi 0, %s49
      %s53 = sphi 0, %s52
      %s69 = sphi 0, %s53
    $region4: #{tpu_custom_call.1} parent=1 // loop_header_branch
      %16 = sbr.rel (%p14) target = $region8
    $region5: #{tpu_custom_call.1} parent=1 // loop_body
      %s18 = ssub.s32 %s13, 1
      %s19 = ssub.s32 %s13, 2
      %s20 = sadd.s32 %s13, 1
      %s21 = ssub.s32 %s13, %s20
      %p22 = scmp.eq.s32.totalorder %s21, 0
      %s24 = sadd.s32 %s23, 1
      %s25 = scalar_select %p22, %s23, %s24
      %p28 = pneg %p22
      %p29 = scmp.eq.s32.totalorder %s13, 1
      %p30 = por %p28, %p29
      %p31 = scmp.ne.s32.totalorder %s23, %s26
      %p32 = scmp.eq.s32.totalorder %s13, 0
      %p33 = por %p31, %p32
      %p34 = scmp.ne.s32.totalorder %s23, %s26
      %p35 = scmp.eq.s32.totalorder %s18, 1
      %p36 = por %p34, %p35
      %p37 = scmp.ne.s32.totalorder %s26, %s27
      %p38 = scmp.eq.s32.totalorder %s18, 0
      %p39 = por %p37, %p38
      %p40 = scmp.ne.s32.totalorder %s26, %s27
      %p41 = scmp.eq.s32.totalorder %s19, 1
      %p42 = por %p40, %p41
      %p44 = scmp.ne.s32.totalorder %s27, %s43
      %p45 = scmp.eq.s32.totalorder %s19, 0
      %p46 = por %p44, %p45
      %s47 = ssub.s32 %s13, %s20
      %p48 = scmp.eq.s32.totalorder %s47, 0
      %s50 = sadd.s32 %s49, 1
      %s51 = scalar_select %p48, %s49, %s50
      %p54 = pneg %p48
      %p55 = scmp.eq.s32.totalorder %s13, 1
      %p56 = por %p54, %p55
      %p57 = scmp.ne.s32.totalorder %s49, %s52
      %p58 = scmp.eq.s32.totalorder %s13, 0
      %p59 = por %p57, %p58
      %p60 = scmp.ne.s32.totalorder %s49, %s52
      %p61 = scmp.eq.s32.totalorder %s18, 1
      %p62 = por %p60, %p61
      %p63 = scmp.ne.s32.totalorder %s52, %s53
      %p64 = scmp.eq.s32.totalorder %s18, 0
      %p65 = por %p63, %p64
      %p66 = scmp.ne.s32.totalorder %s52, %s53
      %p67 = scmp.eq.s32.totalorder %s19, 1
      %p68 = por %p66, %p67
      %p70 = scmp.ne.s32.totalorder %s53, %s69
      %p71 = scmp.eq.s32.totalorder %s19, 0
      %p72 = por %p70, %p71
      %p73 = scmp.le.s32.totalorder 1, %s13
      %p74 = scmp.lt.s32.totalorder %s13, 3
      %p75 = pnand %p73, %p74
      %p76 = pneg %p75
      // Predicated region
      $region9: #{tpu_custom_call.1} parent=5 // pred_check
        _
      $region10: #{tpu_custom_call.1} parent=5 // pred_check_branch
        %78 = sbr.rel (%p75) target = $region12
      $region11: #{tpu_custom_call.1} parent=5 // pred_region
        %s79 = ssub.s32 %s13, 1
      $region12: #{tpu_custom_call.1} parent=5 // pred_fallthru
        _
      %p80 = scmp.lt.s32.totalorder %s13, 2
      // Predicated region
      $region13: #{tpu_custom_call.1} parent=5 // pred_check
        %p81 = pneg %p80
      $region14: #{tpu_custom_call.1} parent=5 // pred_check_branch
        %83 = sbr.rel (%p81) target = $region16
      $region15: #{tpu_custom_call.1} parent=5 // pred_region
        // Predicated region
        $region17: #{tpu_custom_call.1} parent=15 // pred_check
          %p84 = pneg %p33
        $region18: #{tpu_custom_call.1} parent=15 // pred_check_branch
          %86 = sbr.rel (%p84) target = $region20
        $region19: #{tpu_custom_call.1} parent=15 // pred_region
          %s87 = sand.u32 %s23, 1
          %s88 = scalar_lea.sflag [#allocation3], %s87
          %s89 = sand.u32 %s23, 1
          %s90 = smul.addr %s89, 16
          %s91 = scalar_lea.vmem [#allocation2], %s90
          %s93 = ssub.s32 256, 256
          %94 = vsyncadd %s88, %s93
          %s95 = smul.addr %s13, 2
          %s96 = smul.addr %s95, 128
          %s97 = scalar_lea.hbm %s0, %s96
          %s99 = sshll.u32 %s91, 4
          %s100 = int_to_ptr.vmem [resolvable:$true] %s99
          %102 = dma.hbm_to_vmem [thread:$0]  %s97, 256, %s100, %s88
        $region20: #{tpu_custom_call.1} parent=15 // pred_fallthru
          _
      $region16: #{tpu_custom_call.1} parent=5 // pred_fallthru
        _
      %p103 = scmp.le.s32.totalorder 1, %s13
      %p104 = scmp.lt.s32.totalorder %s13, 3
      %p105 = pnand %p103, %p104
      %p106 = pneg %p105
      // Predicated region
      $region21: #{tpu_custom_call.1} parent=5 // pred_check
        _
      $region22: #{tpu_custom_call.1} parent=5 // pred_check_branch
        %108 = sbr.rel (%p105) target = $region24
      $region23: #{tpu_custom_call.1} parent=5 // pred_region
        %s109 = ssub.s32 %s13, 1
        %s110 = sand.u32 %s26, 1
        %s111 = scalar_lea.sflag [#allocation3], %s110
        %s112 = sand.u32 %s26, 1
        %s113 = smul.addr %s112, 16
        %s114 = scalar_lea.vmem [#allocation2], %s113
        // Predicated region
        $region25: #{tpu_custom_call.1} parent=23 // pred_check
          %p115 = pneg %p39
        $region26: #{tpu_custom_call.1} parent=23 // pred_check_branch
          %117 = sbr.rel (%p115) target = $region28
        $region27: #{tpu_custom_call.1} parent=23 // pred_region
          %118 = dma.done %s111, 256
        $region28: #{tpu_custom_call.1} parent=23 // pred_fallthru
          _
        %s119 = sand.u32 %s26, 1
        %s120 = scalar_lea.sflag [#allocation3], %s119
        %s121 = sand.u32 %s26, 1
        %s122 = smul.addr %s121, 16
        %s123 = scalar_lea.vmem [#allocation2], %s122
        %p124 = pneg %p39
        %p125 = pneg %p36
        %p126 = pneg %p65
        %p127 = pneg %p62
        %s128 = sand.u32 %s52, 1
        %s129 = scalar_lea.sflag [#allocation4], %s128
        %s130 = sand.u32 %s52, 1
        %s131 = smul.addr %s130, 8
        %s132 = scalar_lea.vmem [#allocation5], %s131
        %v133 = vld [vmem:[%s114] sm:$0xff]
        %v134 = vld [vmem:[%s114 + $0x8] sm:$0xff]
        %v135 = vmul.f32 %v133, 0.25
        %137 = vrot.lane.b32.xlu0 %v133, 112
        %v138 = vpop.permute.xlu0 %137
        %vm139 = vcmask 130048
        %v141 = vsel %vm139, %v135, 0
        %v143 = vsel %vm139, %v138, 0
        %145 = vmatprep.subr.mxu0 0.0
        %146 = vmatpush1.xpose.msra.mxu0 %v143
        %147 = vmatprep.subr.mxu0 0.0
        %148 = vmatpush1.xpose.msra.mxu0 0.0
        %149 = vmatprep.subr.mxu0 0.0
        %150 = vmatpush1.xpose.msra.mxu0 0.0
        %151 = vmatprep.subr.mxu0 0.0
        %152 = vmatpush1.xpose.msra.mxu0 0.0
        %153 = vmatprep.subr.mxu0 0.0
        %154 = vmatpush1.xpose.msra.mxu0 0.0
        %155 = vmatprep.subr.mxu0 0.0
        %156 = vmatpush1.xpose.msra.mxu0 0.0
        %157 = vmatprep.subr.mxu0 0.0
        %158 = vmatpush1.xpose.msra.mxu0 0.0
        %159 = vmatprep.subr.mxu0 0.0
        %160 = vmatpush1.xpose.msra.mxu0 0.0
        %161 = vmatprep.subr.mxu0 0.0
        %162 = vmatpush1.xpose.msra.mxu0 0.0
        %163 = vmatprep.subr.mxu0 0.0
        %164 = vmatpush1.xpose.msra.mxu0 0.0
        %165 = vmatprep.subr.mxu0 0.0
        %166 = vmatpush1.xpose.msra.mxu0 0.0
        %167 = vmatprep.subr.mxu0 0.0
        %168 = vmatpush1.xpose.msra.mxu0 0.0
        %169 = vmatprep.subr.mxu0 0.0
        %170 = vmatpush1.xpose.msra.mxu0 0.0
        %171 = vmatprep.subr.mxu0 0.0
        %172 = vmatpush1.xpose.msra.mxu0 0.0
        %173 = vmatprep.subr.mxu0 0.0
        %174 = vmatpush1.xpose.msra.mxu0 0.0
        %175 = vmatprep.subr.mxu0 0.0
        %176 = vmatpush1.xpose.msra.mxu0 0.0
        %177 = vmatprep.subr.mxu0 0.0
        %178 = vmatpush1.xpose.msra.mxu0 0.0
        %179 = vmatprep.subr.mxu0 0.0
        %180 = vmatpush1.xpose.msra.mxu0 0.0
        %181 = vmatprep.subr.mxu0 0.0
        %182 = vmatpush1.xpose.msra.mxu0 0.0
        %183 = vmatprep.subr.mxu0 0.0
        %184 = vmatpush1.xpose.msra.mxu0 0.0
        %185 = vmatprep.subr.mxu0 0.0
        %186 = vmatpush1.xpose.msra.mxu0 0.0
        %187 = vmatprep.subr.mxu0 0.0
        %188 = vmatpush1.xpose.msra.mxu0 0.0
        %189 = vmatprep.subr.mxu0 0.0
        %190 = vmatpush1.xpose.msra.mxu0 0.0
        %191 = vmatprep.subr.mxu0 0.0
        %192 = vmatpush1.xpose.msra.mxu0 0.0
        %193 = vmatprep.subr.mxu0 0.0
        %194 = vmatpush1.xpose.msra.mxu0 0.0
        %195 = vmatprep.subr.mxu0 0.0
        %196 = vmatpush1.xpose.msra.mxu0 0.0
        %197 = vmatprep.subr.mxu0 0.0
        %198 = vmatpush1.xpose.msra.mxu0 0.0
        %199 = vmatprep.subr.mxu0 0.0
        %200 = vmatpush1.xpose.msra.mxu0 0.0
        %201 = vmatprep.subr.mxu0 0.0
        %202 = vmatpush1.xpose.msra.mxu0 0.0
        %203 = vmatprep.subr.mxu0 0.0
        %204 = vmatpush1.xpose.msra.mxu0 0.0
        %205 = vmatprep.subr.mxu0 0.0
        %206 = vmatpush1.xpose.msra.mxu0 0.0
        %207 = vmatprep.subr.mxu0 0.0
        %208 = vmatpush1.xpose.msra.mxu0 0.0
        %209 = vmatprep.mubr.f32.mxu0 0.0
        %210 = vmatmul.mubr.f32.gmra.mrb[0].mxu0 %v141
        %v211 = vpop.f32.mrb[0].mxu0
        %v212 = vadd.f32 0.0, %v211
        %v213 = vpop.f32.mrb[0].mxu0
        %214 = vdwg.mxu0
        %vm215 = vcmask 64512
        %v216 = vsel %vm215, %v212, -inf
        %217 = vmax.xlane.f32.xlu0 %v216
        %v218 = vpop.xlane.xlu0 %217
        %v219 = vsub.f32 %v212, %v218
        %v220 = vmul.f32 %v219, 1.442695
        %v221 = vpow.pop %v220
        %v222 = vsel %vm215, %v221, 0.0
        %223 = vadd.xlane.f32.xlu0 %v222
        %v224 = vpop.xlane.xlu0 %223
        %v225 = vrcp.pop %v224
        %226 = vrot.lane.b32.xlu0 %v133, 96
        %v227 = vpop.permute.xlu0 %226
        %v230 = vsel %vm215, %v221, 0
        %232 = vmatprep.subr.mxu0 0.0
        %233 = vmatpush1.msra.mxu0 %v227
        %234 = vmatprep.subr.mxu0 0.0
        %235 = vmatpush1.msra.mxu0 0.0
        %236 = vmatprep.subr.mxu0 0.0
        %237 = vmatpush1.msra.mxu0 0.0
        %238 = vmatprep.subr.mxu0 0.0
        %239 = vmatpush1.msra.mxu0 0.0
        %240 = vmatprep.subr.mxu0 0.0
        %241 = vmatpush1.msra.mxu0 0.0
        %242 = vmatprep.subr.mxu0 0.0
        %243 = vmatpush1.msra.mxu0 0.0
        %244 = vmatprep.subr.mxu0 0.0
        %245 = vmatpush1.msra.mxu0 0.0
        %246 = vmatprep.subr.mxu0 0.0
        %247 = vmatpush1.msra.mxu0 0.0
        %248 = vmatprep.subr.mxu0 0.0
        %249 = vmatpush1.msra.mxu0 0.0
        %250 = vmatprep.subr.mxu0 0.0
        %251 = vmatpush1.msra.mxu0 0.0
        %252 = vmatprep.subr.mxu0 0.0
        %253 = vmatpush1.msra.mxu0 0.0
        %254 = vmatprep.subr.mxu0 0.0
        %255 = vmatpush1.msra.mxu0 0.0
        %256 = vmatprep.subr.mxu0 0.0
        %257 = vmatpush1.msra.mxu0 0.0
        %258 = vmatprep.subr.mxu0 0.0
        %259 = vmatpush1.msra.mxu0 0.0
        %260 = vmatprep.subr.mxu0 0.0
        %261 = vmatpush1.msra.mxu0 0.0
        %262 = vmatprep.subr.mxu0 0.0
        %263 = vmatpush1.msra.mxu0 0.0
        %264 = vmatprep.subr.mxu0 0.0
        %265 = vmatpush1.msra.mxu0 0.0
        %266 = vmatprep.subr.mxu0 0.0
        %267 = vmatpush1.msra.mxu0 0.0
        %268 = vmatprep.subr.mxu0 0.0
        %269 = vmatpush1.msra.mxu0 0.0
        %270 = vmatprep.subr.mxu0 0.0
        %271 = vmatpush1.msra.mxu0 0.0
        %272 = vmatprep.subr.mxu0 0.0
        %273 = vmatpush1.msra.mxu0 0.0
        %274 = vmatprep.subr.mxu0 0.0
        %275 = vmatpush1.msra.mxu0 0.0
        %276 = vmatprep.subr.mxu0 0.0
        %277 = vmatpush1.msra.mxu0 0.0
        %278 = vmatprep.subr.mxu0 0.0
        %279 = vmatpush1.msra.mxu0 0.0
        %280 = vmatprep.subr.mxu0 0.0
        %281 = vmatpush1.msra.mxu0 0.0
        %282 = vmatprep.subr.mxu0 0.0
        %283 = vmatpush1.msra.mxu0 0.0
        %284 = vmatprep.subr.mxu0 0.0
        %285 = vmatpush1.msra.mxu0 0.0
        %286 = vmatprep.subr.mxu0 0.0
        %287 = vmatpush1.msra.mxu0 0.0
        %288 = vmatprep.subr.mxu0 0.0
        %289 = vmatpush1.msra.mxu0 0.0
        %290 = vmatprep.subr.mxu0 0.0
        %291 = vmatpush1.msra.mxu0 0.0
        %292 = vmatprep.subr.mxu0 0.0
        %293 = vmatpush1.msra.mxu0 0.0
        %294 = vmatprep.subr.mxu0 0.0
        %295 = vmatpush1.msra.mxu0 0.0
        %296 = vmatprep.mubr.f32.mxu0 0.0
        %297 = vmatmul.mubr.f32.gmra.mrb[0].mxu0 %v230
        %v298 = vpop.f32.mrb[0].mxu0
        %v299 = vadd.f32 0.0, %v298
        %v300 = vpop.f32.mrb[0].mxu0
        %301 = vdwg.mxu0
        %v302 = vmul.f32 %v299, %v225
        %303 = vst.msk [vmem:[%s132] sm:$0xff] %vm139, %v302
        %304 = vrot.lane.b32.xlu0 %v135, 80
        %v305 = vpop.permute.xlu0 %304
        %306 = vrot.lane.b32.xlu0 %v133, 64
        %v307 = vpop.permute.xlu0 %306
        %v308 = vsel %vm139, %v305, 0
        %v310 = vsel %vm139, %v307, 0
        %312 = vmatprep.subr.mxu0 0.0
        %313 = vmatpush1.xpose.msra.mxu0 %v310
        %314 = vmatprep.subr.mxu0 0.0
        %315 = vmatpush1.xpose.msra.mxu0 0.0
        %316 = vmatprep.subr.mxu0 0.0
        %317 = vmatpush1.xpose.msra.mxu0 0.0
        %318 = vmatprep.subr.mxu0 0.0
        %319 = vmatpush1.xpose.msra.mxu0 0.0
        %320 = vmatprep.subr.mxu0 0.0
        %321 = vmatpush1.xpose.msra.mxu0 0.0
        %322 = vmatprep.subr.mxu0 0.0
        %323 = vmatpush1.xpose.msra.mxu0 0.0
        %324 = vmatprep.subr.mxu0 0.0
        %325 = vmatpush1.xpose.msra.mxu0 0.0
        %326 = vmatprep.subr.mxu0 0.0
        %327 = vmatpush1.xpose.msra.mxu0 0.0
        %328 = vmatprep.subr.mxu0 0.0
        %329 = vmatpush1.xpose.msra.mxu0 0.0
        %330 = vmatprep.subr.mxu0 0.0
        %331 = vmatpush1.xpose.msra.mxu0 0.0
        %332 = vmatprep.subr.mxu0 0.0
        %333 = vmatpush1.xpose.msra.mxu0 0.0
        %334 = vmatprep.subr.mxu0 0.0
        %335 = vmatpush1.xpose.msra.mxu0 0.0
        %336 = vmatprep.subr.mxu0 0.0
        %337 = vmatpush1.xpose.msra.mxu0 0.0
        %338 = vmatprep.subr.mxu0 0.0
        %339 = vmatpush1.xpose.msra.mxu0 0.0
        %340 = vmatprep.subr.mxu0 0.0
        %341 = vmatpush1.xpose.msra.mxu0 0.0
        %342 = vmatprep.subr.mxu0 0.0
        %343 = vmatpush1.xpose.msra.mxu0 0.0
        %344 = vmatprep.subr.mxu0 0.0
        %345 = vmatpush1.xpose.msra.mxu0 0.0
        %346 = vmatprep.subr.mxu0 0.0
        %347 = vmatpush1.xpose.msra.mxu0 0.0
        %348 = vmatprep.subr.mxu0 0.0
        %349 = vmatpush1.xpose.msra.mxu0 0.0
        %350 = vmatprep.subr.mxu0 0.0
        %351 = vmatpush1.xpose.msra.mxu0 0.0
        %352 = vmatprep.subr.mxu0 0.0
        %353 = vmatpush1.xpose.msra.mxu0 0.0
        %354 = vmatprep.subr.mxu0 0.0
        %355 = vmatpush1.xpose.msra.mxu0 0.0
        %356 = vmatprep.subr.mxu0 0.0
        %357 = vmatpush1.xpose.msra.mxu0 0.0
        %358 = vmatprep.subr.mxu0 0.0
        %359 = vmatpush1.xpose.msra.mxu0 0.0
        %360 = vmatprep.subr.mxu0 0.0
        %361 = vmatpush1.xpose.msra.mxu0 0.0
        %362 = vmatprep.subr.mxu0 0.0
        %363 = vmatpush1.xpose.msra.mxu0 0.0
        %364 = vmatprep.subr.mxu0 0.0
        %365 = vmatpush1.xpose.msra.mxu0 0.0
        %366 = vmatprep.subr.mxu0 0.0
        %367 = vmatpush1.xpose.msra.mxu0 0.0
        %368 = vmatprep.subr.mxu0 0.0
        %369 = vmatpush1.xpose.msra.mxu0 0.0
        %370 = vmatprep.subr.mxu0 0.0
        %371 = vmatpush1.xpose.msra.mxu0 0.0
        %372 = vmatprep.subr.mxu0 0.0
        %373 = vmatpush1.xpose.msra.mxu0 0.0
        %374 = vmatprep.subr.mxu0 0.0
        %375 = vmatpush1.xpose.msra.mxu0 0.0
        %376 = vmatprep.mubr.f32.mxu0 0.0
        %377 = vmatmul.mubr.f32.gmra.mrb[0].mxu0 %v308
        %v378 = vpop.f32.mrb[0].mxu0
        %v379 = vadd.f32 0.0, %v378
        %v380 = vpop.f32.mrb[0].mxu0
        %381 = vdwg.mxu0
        %v382 = vsel %vm215, %v379, -inf
        %383 = vmax.xlane.f32.xlu0 %v382
        %v384 = vpop.xlane.xlu0 %383
        %v385 = vsub.f32 %v379, %v384
        %v386 = vmul.f32 %v385, 1.442695
        %v387 = vpow.pop %v386
        %v388 = vsel %vm215, %v387, 0.0
        %389 = vadd.xlane.f32.xlu0 %v388
        %v390 = vpop.xlane.xlu0 %389
        %v391 = vrcp.pop %v390
        %392 = vrot.lane.b32.xlu0 %v133, 48
        %v393 = vpop.permute.xlu0 %392
        %v396 = vsel %vm215, %v387, 0
        %398 = vmatprep.subr.mxu0 0.0
        %399 = vmatpush1.msra.mxu0 %v393
        %400 = vmatprep.subr.mxu0 0.0
        %401 = vmatpush1.msra.mxu0 0.0
        %402 = vmatprep.subr.mxu0 0.0
        %403 = vmatpush1.msra.mxu0 0.0
        %404 = vmatprep.subr.mxu0 0.0
        %405 = vmatpush1.msra.mxu0 0.0
        %406 = vmatprep.subr.mxu0 0.0
        %407 = vmatpush1.msra.mxu0 0.0
        %408 = vmatprep.subr.mxu0 0.0
        %409 = vmatpush1.msra.mxu0 0.0
        %410 = vmatprep.subr.mxu0 0.0
        %411 = vmatpush1.msra.mxu0 0.0
        %412 = vmatprep.subr.mxu0 0.0
        %413 = vmatpush1.msra.mxu0 0.0
        %414 = vmatprep.subr.mxu0 0.0
        %415 = vmatpush1.msra.mxu0 0.0
        %416 = vmatprep.subr.mxu0 0.0
        %417 = vmatpush1.msra.mxu0 0.0
        %418 = vmatprep.subr.mxu0 0.0
        %419 = vmatpush1.msra.mxu0 0.0
        %420 = vmatprep.subr.mxu0 0.0
        %421 = vmatpush1.msra.mxu0 0.0
        %422 = vmatprep.subr.mxu0 0.0
        %423 = vmatpush1.msra.mxu0 0.0
        %424 = vmatprep.subr.mxu0 0.0
        %425 = vmatpush1.msra.mxu0 0.0
        %426 = vmatprep.subr.mxu0 0.0
        %427 = vmatpush1.msra.mxu0 0.0
        %428 = vmatprep.subr.mxu0 0.0
        %429 = vmatpush1.msra.mxu0 0.0
        %430 = vmatprep.subr.mxu0 0.0
        %431 = vmatpush1.msra.mxu0 0.0
        %432 = vmatprep.subr.mxu0 0.0
        %433 = vmatpush1.msra.mxu0 0.0
        %434 = vmatprep.subr.mxu0 0.0
        %435 = vmatpush1.msra.mxu0 0.0
        %436 = vmatprep.subr.mxu0 0.0
        %437 = vmatpush1.msra.mxu0 0.0
        %438 = vmatprep.subr.mxu0 0.0
        %439 = vmatpush1.msra.mxu0 0.0
        %440 = vmatprep.subr.mxu0 0.0
        %441 = vmatpush1.msra.mxu0 0.0
        %442 = vmatprep.subr.mxu0 0.0
        %443 = vmatpush1.msra.mxu0 0.0
        %444 = vmatprep.subr.mxu0 0.0
        %445 = vmatpush1.msra.mxu0 0.0
        %446 = vmatprep.subr.mxu0 0.0
        %447 = vmatpush1.msra.mxu0 0.0
        %448 = vmatprep.subr.mxu0 0.0
        %449 = vmatpush1.msra.mxu0 0.0
        %450 = vmatprep.subr.mxu0 0.0
        %451 = vmatpush1.msra.mxu0 0.0
        %452 = vmatprep.subr.mxu0 0.0
        %453 = vmatpush1.msra.mxu0 0.0
        %454 = vmatprep.subr.mxu0 0.0
        %455 = vmatpush1.msra.mxu0 0.0
        %456 = vmatprep.subr.mxu0 0.0
        %457 = vmatpush1.msra.mxu0 0.0
        %458 = vmatprep.subr.mxu0 0.0
        %459 = vmatpush1.msra.mxu0 0.0
        %460 = vmatprep.subr.mxu0 0.0
        %461 = vmatpush1.msra.mxu0 0.0
        %462 = vmatprep.mubr.f32.mxu0 0.0
        %463 = vmatmul.mubr.f32.gmra.mrb[0].mxu0 %v396
        %v464 = vpop.f32.mrb[0].mxu0
        %v465 = vadd.f32 0.0, %v464
        %v466 = vpop.f32.mrb[0].mxu0
        %467 = vdwg.mxu0
        %v468 = vmul.f32 %v465, %v391
        %470 = vrot.lane.b32.xlu0 %v468, 16
        %v471 = vpop.permute.xlu0 %470
        %vm473 = vcmask 261248
        %474 = vst.msk [vmem:[%s132] sm:$0xff] %vm473, %v471
        %475 = vrot.lane.b32.xlu0 %v135, 32
        %v476 = vpop.permute.xlu0 %475
        %477 = vrot.lane.b32.xlu0 %v133, 16
        %v478 = vpop.permute.xlu0 %477
        %v479 = vsel %vm139, %v476, 0
        %v481 = vsel %vm139, %v478, 0
        %483 = vmatprep.subr.mxu0 0.0
        %484 = vmatpush1.xpose.msra.mxu0 %v481
        %485 = vmatprep.subr.mxu0 0.0
        %486 = vmatpush1.xpose.msra.mxu0 0.0
        %487 = vmatprep.subr.mxu0 0.0
        %488 = vmatpush1.xpose.msra.mxu0 0.0
        %489 = vmatprep.subr.mxu0 0.0
        %490 = vmatpush1.xpose.msra.mxu0 0.0
        %491 = vmatprep.subr.mxu0 0.0
        %492 = vmatpush1.xpose.msra.mxu0 0.0
        %493 = vmatprep.subr.mxu0 0.0
        %494 = vmatpush1.xpose.msra.mxu0 0.0
        %495 = vmatprep.subr.mxu0 0.0
        %496 = vmatpush1.xpose.msra.mxu0 0.0
        %497 = vmatprep.subr.mxu0 0.0
        %498 = vmatpush1.xpose.msra.mxu0 0.0
        %499 = vmatprep.subr.mxu0 0.0
        %500 = vmatpush1.xpose.msra.mxu0 0.0
        %501 = vmatprep.subr.mxu0 0.0
        %502 = vmatpush1.xpose.msra.mxu0 0.0
        %503 = vmatprep.subr.mxu0 0.0
        %504 = vmatpush1.xpose.msra.mxu0 0.0
        %505 = vmatprep.subr.mxu0 0.0
        %506 = vmatpush1.xpose.msra.mxu0 0.0
        %507 = vmatprep.subr.mxu0 0.0
        %508 = vmatpush1.xpose.msra.mxu0 0.0
        %509 = vmatprep.subr.mxu0 0.0
        %510 = vmatpush1.xpose.msra.mxu0 0.0
        %511 = vmatprep.subr.mxu0 0.0
        %512 = vmatpush1.xpose.msra.mxu0 0.0
        %513 = vmatprep.subr.mxu0 0.0
        %514 = vmatpush1.xpose.msra.mxu0 0.0
        %515 = vmatprep.subr.mxu0 0.0
        %516 = vmatpush1.xpose.msra.mxu0 0.0
        %517 = vmatprep.subr.mxu0 0.0
        %518 = vmatpush1.xpose.msra.mxu0 0.0
        %519 = vmatprep.subr.mxu0 0.0
        %520 = vmatpush1.xpose.msra.mxu0 0.0
        %521 = vmatprep.subr.mxu0 0.0
        %522 = vmatpush1.xpose.msra.mxu0 0.0
        %523 = vmatprep.subr.mxu0 0.0
        %524 = vmatpush1.xpose.msra.mxu0 0.0
        %525 = vmatprep.subr.mxu0 0.0
        %526 = vmatpush1.xpose.msra.mxu0 0.0
        %527 = vmatprep.subr.mxu0 0.0
        %528 = vmatpush1.xpose.msra.mxu0 0.0
        %529 = vmatprep.subr.mxu0 0.0
        %530 = vmatpush1.xpose.msra.mxu0 0.0
        %531 = vmatprep.subr.mxu0 0.0
        %532 = vmatpush1.xpose.msra.mxu0 0.0
        %533 = vmatprep.subr.mxu0 0.0
        %534 = vmatpush1.xpose.msra.mxu0 0.0
        %535 = vmatprep.subr.mxu0 0.0
        %536 = vmatpush1.xpose.msra.mxu0 0.0
        %537 = vmatprep.subr.mxu0 0.0
        %538 = vmatpush1.xpose.msra.mxu0 0.0
        %539 = vmatprep.subr.mxu0 0.0
        %540 = vmatpush1.xpose.msra.mxu0 0.0
        %541 = vmatprep.subr.mxu0 0.0
        %542 = vmatpush1.xpose.msra.mxu0 0.0
        %543 = vmatprep.subr.mxu0 0.0
        %544 = vmatpush1.xpose.msra.mxu0 0.0
        %545 = vmatprep.subr.mxu0 0.0
        %546 = vmatpush1.xpose.msra.mxu0 0.0
        %547 = vmatprep.mubr.f32.mxu0 0.0
        %548 = vmatmul.mubr.f32.gmra.mrb[0].mxu0 %v479
        %v549 = vpop.f32.mrb[0].mxu0
        %v550 = vadd.f32 0.0, %v549
        %v551 = vpop.f32.mrb[0].mxu0
        %552 = vdwg.mxu0
        %v553 = vsel %vm215, %v550, -inf
        %554 = vmax.xlane.f32.xlu0 %v553
        %v555 = vpop.xlane.xlu0 %554
        %v556 = vsub.f32 %v550, %v555
        %v557 = vmul.f32 %v556, 1.442695
        %v558 = vpow.pop %v557
        %v559 = vsel %vm215, %v558, 0.0
        %560 = vadd.xlane.f32.xlu0 %v559
        %v561 = vpop.xlane.xlu0 %560
        %v562 = vrcp.pop %v561
        %v564 = vsel %vm215, %v558, 0
        %566 = vmatprep.subr.mxu0 0.0
        %567 = vmatpush1.msra.mxu0 %v134
        %568 = vmatprep.subr.mxu0 0.0
        %569 = vmatpush1.msra.mxu0 0.0
        %570 = vmatprep.subr.mxu0 0.0
        %571 = vmatpush1.msra.mxu0 0.0
        %572 = vmatprep.subr.mxu0 0.0
        %573 = vmatpush1.msra.mxu0 0.0
        %574 = vmatprep.subr.mxu0 0.0
        %575 = vmatpush1.msra.mxu0 0.0
        %576 = vmatprep.subr.mxu0 0.0
        %577 = vmatpush1.msra.mxu0 0.0
        %578 = vmatprep.subr.mxu0 0.0
        %579 = vmatpush1.msra.mxu0 0.0
        %580 = vmatprep.subr.mxu0 0.0
        %581 = vmatpush1.msra.mxu0 0.0
        %582 = vmatprep.subr.mxu0 0.0
        %583 = vmatpush1.msra.mxu0 0.0
        %584 = vmatprep.subr.mxu0 0.0
        %585 = vmatpush1.msra.mxu0 0.0
        %586 = vmatprep.subr.mxu0 0.0
        %587 = vmatpush1.msra.mxu0 0.0
        %588 = vmatprep.subr.mxu0 0.0
        %589 = vmatpush1.msra.mxu0 0.0
        %590 = vmatprep.subr.mxu0 0.0
        %591 = vmatpush1.msra.mxu0 0.0
        %592 = vmatprep.subr.mxu0 0.0
        %593 = vmatpush1.msra.mxu0 0.0
        %594 = vmatprep.subr.mxu0 0.0
        %595 = vmatpush1.msra.mxu0 0.0
        %596 = vmatprep.subr.mxu0 0.0
        %597 = vmatpush1.msra.mxu0 0.0
        %598 = vmatprep.subr.mxu0 0.0
        %599 = vmatpush1.msra.mxu0 0.0
        %600 = vmatprep.subr.mxu0 0.0
        %601 = vmatpush1.msra.mxu0 0.0
        %602 = vmatprep.subr.mxu0 0.0
        %603 = vmatpush1.msra.mxu0 0.0
        %604 = vmatprep.subr.mxu0 0.0
        %605 = vmatpush1.msra.mxu0 0.0
        %606 = vmatprep.subr.mxu0 0.0
        %607 = vmatpush1.msra.mxu0 0.0
        %608 = vmatprep.subr.mxu0 0.0
        %609 = vmatpush1.msra.mxu0 0.0
        %610 = vmatprep.subr.mxu0 0.0
        %611 = vmatpush1.msra.mxu0 0.0
        %612 = vmatprep.subr.mxu0 0.0
        %613 = vmatpush1.msra.mxu0 0.0
        %614 = vmatprep.subr.mxu0 0.0
        %615 = vmatpush1.msra.mxu0 0.0
        %616 = vmatprep.subr.mxu0 0.0
        %617 = vmatpush1.msra.mxu0 0.0
        %618 = vmatprep.subr.mxu0 0.0
        %619 = vmatpush1.msra.mxu0 0.0
        %620 = vmatprep.subr.mxu0 0.0
        %621 = vmatpush1.msra.mxu0 0.0
        %622 = vmatprep.subr.mxu0 0.0
        %623 = vmatpush1.msra.mxu0 0.0
        %624 = vmatprep.subr.mxu0 0.0
        %625 = vmatpush1.msra.mxu0 0.0
        %626 = vmatprep.subr.mxu0 0.0
        %627 = vmatpush1.msra.mxu0 0.0
        %628 = vmatprep.subr.mxu0 0.0
        %629 = vmatpush1.msra.mxu0 0.0
        %630 = vmatprep.mubr.f32.mxu0 0.0
        %631 = vmatmul.mubr.f32.gmra.mrb[0].mxu0 %v564
        %v632 = vpop.f32.mrb[0].mxu0
        %v633 = vadd.f32 0.0, %v632
        %v634 = vpop.f32.mrb[0].mxu0
        %635 = vdwg.mxu0
        %v636 = vmul.f32 %v633, %v562
        %638 = vrot.lane.b32.xlu0 %v636, 32
        %v639 = vpop.permute.xlu0 %638
        %vm641 = vcmask 392448
        %642 = vst.msk [vmem:[%s132] sm:$0xff] %vm641, %v639
        %v643 = vmul.f32 %v134, 0.25
        %645 = vrot.lane.b32.xlu0 %v643, 112
        %v646 = vpop.permute.xlu0 %645
        %648 = vrot.lane.b32.xlu0 %v134, 96
        %v649 = vpop.permute.xlu0 %648
        %v650 = vsel %vm139, %v646, 0
        %v652 = vsel %vm139, %v649, 0
        %654 = vmatprep.subr.mxu0 0.0
        %655 = vmatpush1.xpose.msra.mxu0 %v652
        %656 = vmatprep.subr.mxu0 0.0
        %657 = vmatpush1.xpose.msra.mxu0 0.0
        %658 = vmatprep.subr.mxu0 0.0
        %659 = vmatpush1.xpose.msra.mxu0 0.0
        %660 = vmatprep.subr.mxu0 0.0
        %661 = vmatpush1.xpose.msra.mxu0 0.0
        %662 = vmatprep.subr.mxu0 0.0
        %663 = vmatpush1.xpose.msra.mxu0 0.0
        %664 = vmatprep.subr.mxu0 0.0
        %665 = vmatpush1.xpose.msra.mxu0 0.0
        %666 = vmatprep.subr.mxu0 0.0
        %667 = vmatpush1.xpose.msra.mxu0 0.0
        %668 = vmatprep.subr.mxu0 0.0
        %669 = vmatpush1.xpose.msra.mxu0 0.0
        %670 = vmatprep.subr.mxu0 0.0
        %671 = vmatpush1.xpose.msra.mxu0 0.0
        %672 = vmatprep.subr.mxu0 0.0
        %673 = vmatpush1.xpose.msra.mxu0 0.0
        %674 = vmatprep.subr.mxu0 0.0
        %675 = vmatpush1.xpose.msra.mxu0 0.0
        %676 = vmatprep.subr.mxu0 0.0
        %677 = vmatpush1.xpose.msra.mxu0 0.0
        %678 = vmatprep.subr.mxu0 0.0
        %679 = vmatpush1.xpose.msra.mxu0 0.0
        %680 = vmatprep.subr.mxu0 0.0
        %681 = vmatpush1.xpose.msra.mxu0 0.0
        %682 = vmatprep.subr.mxu0 0.0
        %683 = vmatpush1.xpose.msra.mxu0 0.0
        %684 = vmatprep.subr.mxu0 0.0
        %685 = vmatpush1.xpose.msra.mxu0 0.0
        %686 = vmatprep.subr.mxu0 0.0
        %687 = vmatpush1.xpose.msra.mxu0 0.0
        %688 = vmatprep.subr.mxu0 0.0
        %689 = vmatpush1.xpose.msra.mxu0 0.0
        %690 = vmatprep.subr.mxu0 0.0
        %691 = vmatpush1.xpose.msra.mxu0 0.0
        %692 = vmatprep.subr.mxu0 0.0
        %693 = vmatpush1.xpose.msra.mxu0 0.0
        %694 = vmatprep.subr.mxu0 0.0
        %695 = vmatpush1.xpose.msra.mxu0 0.0
        %696 = vmatprep.subr.mxu0 0.0
        %697 = vmatpush1.xpose.msra.mxu0 0.0
        %698 = vmatprep.subr.mxu0 0.0
        %699 = vmatpush1.xpose.msra.mxu0 0.0
        %700 = vmatprep.subr.mxu0 0.0
        %701 = vmatpush1.xpose.msra.mxu0 0.0
        %702 = vmatprep.subr.mxu0 0.0
        %703 = vmatpush1.xpose.msra.mxu0 0.0
        %704 = vmatprep.subr.mxu0 0.0
        %705 = vmatpush1.xpose.msra.mxu0 0.0
        %706 = vmatprep.subr.mxu0 0.0
        %707 = vmatpush1.xpose.msra.mxu0 0.0
        %708 = vmatprep.subr.mxu0 0.0
        %709 = vmatpush1.xpose.msra.mxu0 0.0
        %710 = vmatprep.subr.mxu0 0.0
        %711 = vmatpush1.xpose.msra.mxu0 0.0
        %712 = vmatprep.subr.mxu0 0.0
        %713 = vmatpush1.xpose.msra.mxu0 0.0
        %714 = vmatprep.subr.mxu0 0.0
        %715 = vmatpush1.xpose.msra.mxu0 0.0
        %716 = vmatprep.subr.mxu0 0.0
        %717 = vmatpush1.xpose.msra.mxu0 0.0
        %718 = vmatprep.mubr.f32.mxu0 0.0
        %719 = vmatmul.mubr.f32.gmra.mrb[0].mxu0 %v650
        %v720 = vpop.f32.mrb[0].mxu0
        %v721 = vadd.f32 0.0, %v720
        %v722 = vpop.f32.mrb[0].mxu0
        %723 = vdwg.mxu0
        %v724 = vsel %vm215, %v721, -inf
        %725 = vmax.xlane.f32.xlu0 %v724
        %v726 = vpop.xlane.xlu0 %725
        %v727 = vsub.f32 %v721, %v726
        %v728 = vmul.f32 %v727, 1.442695
        %v729 = vpow.pop %v728
        %v730 = vsel %vm215, %v729, 0.0
        %731 = vadd.xlane.f32.xlu0 %v730
        %v732 = vpop.xlane.xlu0 %731
        %v733 = vrcp.pop %v732
        %734 = vrot.lane.b32.xlu0 %v134, 80
        %v735 = vpop.permute.xlu0 %734
        %v738 = vsel %vm215, %v729, 0
        %740 = vmatprep.subr.mxu0 0.0
        %741 = vmatpush1.msra.mxu0 %v735
        %742 = vmatprep.subr.mxu0 0.0
        %743 = vmatpush1.msra.mxu0 0.0
        %744 = vmatprep.subr.mxu0 0.0
        %745 = vmatpush1.msra.mxu0 0.0
        %746 = vmatprep.subr.mxu0 0.0
        %747 = vmatpush1.msra.mxu0 0.0
        %748 = vmatprep.subr.mxu0 0.0
        %749 = vmatpush1.msra.mxu0 0.0
        %750 = vmatprep.subr.mxu0 0.0
        %751 = vmatpush1.msra.mxu0 0.0
        %752 = vmatprep.subr.mxu0 0.0
        %753 = vmatpush1.msra.mxu0 0.0
        %754 = vmatprep.subr.mxu0 0.0
        %755 = vmatpush1.msra.mxu0 0.0
        %756 = vmatprep.subr.mxu0 0.0
        %757 = vmatpush1.msra.mxu0 0.0
        %758 = vmatprep.subr.mxu0 0.0
        %759 = vmatpush1.msra.mxu0 0.0
        %760 = vmatprep.subr.mxu0 0.0
        %761 = vmatpush1.msra.mxu0 0.0
        %762 = vmatprep.subr.mxu0 0.0
        %763 = vmatpush1.msra.mxu0 0.0
        %764 = vmatprep.subr.mxu0 0.0
        %765 = vmatpush1.msra.mxu0 0.0
        %766 = vmatprep.subr.mxu0 0.0
        %767 = vmatpush1.msra.mxu0 0.0
        %768 = vmatprep.subr.mxu0 0.0
        %769 = vmatpush1.msra.mxu0 0.0
        %770 = vmatprep.subr.mxu0 0.0
        %771 = vmatpush1.msra.mxu0 0.0
        %772 = vmatprep.subr.mxu0 0.0
        %773 = vmatpush1.msra.mxu0 0.0
        %774 = vmatprep.subr.mxu0 0.0
        %775 = vmatpush1.msra.mxu0 0.0
        %776 = vmatprep.subr.mxu0 0.0
        %777 = vmatpush1.msra.mxu0 0.0
        %778 = vmatprep.subr.mxu0 0.0
        %779 = vmatpush1.msra.mxu0 0.0
        %780 = vmatprep.subr.mxu0 0.0
        %781 = vmatpush1.msra.mxu0 0.0
        %782 = vmatprep.subr.mxu0 0.0
        %783 = vmatpush1.msra.mxu0 0.0
        %784 = vmatprep.subr.mxu0 0.0
        %785 = vmatpush1.msra.mxu0 0.0
        %786 = vmatprep.subr.mxu0 0.0
        %787 = vmatpush1.msra.mxu0 0.0
        %788 = vmatprep.subr.mxu0 0.0
        %789 = vmatpush1.msra.mxu0 0.0
        %790 = vmatprep.subr.mxu0 0.0
        %791 = vmatpush1.msra.mxu0 0.0
        %792 = vmatprep.subr.mxu0 0.0
        %793 = vmatpush1.msra.mxu0 0.0
        %794 = vmatprep.subr.mxu0 0.0
        %795 = vmatpush1.msra.mxu0 0.0
        %796 = vmatprep.subr.mxu0 0.0
        %797 = vmatpush1.msra.mxu0 0.0
        %798 = vmatprep.subr.mxu0 0.0
        %799 = vmatpush1.msra.mxu0 0.0
        %800 = vmatprep.subr.mxu0 0.0
        %801 = vmatpush1.msra.mxu0 0.0
        %802 = vmatprep.subr.mxu0 0.0
        %803 = vmatpush1.msra.mxu0 0.0
        %804 = vmatprep.mubr.f32.mxu0 0.0
        %805 = vmatmul.mubr.f32.gmra.mrb[0].mxu0 %v738
        %v806 = vpop.f32.mrb[0].mxu0
        %v807 = vadd.f32 0.0, %v806
        %v808 = vpop.f32.mrb[0].mxu0
        %809 = vdwg.mxu0
        %v810 = vmul.f32 %v807, %v733
        %812 = vrot.lane.b32.xlu0 %v810, 48
        %v813 = vpop.permute.xlu0 %812
        %vm815 = vcmask 523648
        %816 = vst.msk [vmem:[%s132] sm:$0xff] %vm815, %v813
        %s817 = sand.u32 %s52, 1
        %s818 = scalar_lea.sflag [#allocation4], %s817
        %s819 = sand.u32 %s52, 1
        %s820 = smul.addr %s819, 8
        %s821 = scalar_lea.vmem [#allocation5], %s820
        // Predicated region
        $region29: #{tpu_custom_call.1} parent=23 // pred_check
          %p822 = pneg %p62
        $region30: #{tpu_custom_call.1} parent=23 // pred_check_branch
          %824 = sbr.rel (%p822) target = $region32
        $region31: #{tpu_custom_call.1} parent=23 // pred_region
          %s826 = ssub.s32 128, 128
          %827 = vsyncadd %s818, %s826
          %s828 = smul.addr %s18, 128
          %s829 = scalar_lea.hbm %s1, %s828
          %s831 = sshll.u32 %s821, 4
          %s832 = int_to_ptr.vmem [resolvable:$true] %s831
          %834 = dma.vmem_to_hbm [thread:$0]  %s832, 128, %s829, %s818
        $region32: #{tpu_custom_call.1} parent=23 // pred_fallthru
          _
      $region24: #{tpu_custom_call.1} parent=5 // pred_fallthru
        _
      %p835 = scmp.le.s32.totalorder 2, %s13
      // Predicated region
      $region33: #{tpu_custom_call.1} parent=5 // pred_check
        %p836 = pneg %p835
      $region34: #{tpu_custom_call.1} parent=5 // pred_check_branch
        %838 = sbr.rel (%p836) target = $region36
      $region35: #{tpu_custom_call.1} parent=5 // pred_region
        %s839 = ssub.s32 %s13, 2
        // Predicated region
        $region37: #{tpu_custom_call.1} parent=35 // pred_check
          %p840 = pneg %p68
        $region38: #{tpu_custom_call.1} parent=35 // pred_check_branch
          %842 = sbr.rel (%p840) target = $region40
        $region39: #{tpu_custom_call.1} parent=35 // pred_region
          %s843 = sand.u32 %s53, 1
          %s844 = scalar_lea.sflag [#allocation4], %s843
          %s845 = sand.u32 %s53, 1
          %s846 = smul.addr %s845, 8
          %s847 = scalar_lea.vmem [#allocation5], %s846
          %848 = dma.done %s844, 128
        $region40: #{tpu_custom_call.1} parent=35 // pred_fallthru
          _
      $region36: #{tpu_custom_call.1} parent=5 // pred_fallthru
        _
    $region6: #{tpu_custom_call.1} parent=1 // loop_footer
      %s17 = sadd.s32 1, %s13
    $region7: #{tpu_custom_call.1} parent=1 // loop_footer_branch
      %12 = sbr.rel target = $region3
    $region8: #{tpu_custom_call.1} parent=1 // loop_exit
      _
    %849 = vsyncpa [#allocation3], 1
    %s850 = scalar_lea.sflag [#allocation3], 1
    %851 = vsyncpa %s850, 1
    %852 = vsyncpa [#allocation4], 1
    %s853 = scalar_lea.sflag [#allocation4], 1
    %854 = vsyncpa %s853, 1

</llo_original>
